<compile_context>
chip_gen: v7x
topology: tpu7x:2x2x1
jax: 0.10.0
libtpu: 0.0.40
codegen_flags: <defaults>
</compile_context>

<pallas_src>
import functools

import jax
import jax.numpy as jnp
from jax.experimental import pallas as pl
from jax.experimental.pallas import tpu as pltpu


def _ce_partial_kernel(logits_ref, targets_ref, out_ref, acc_ref, *, hw, ragged):
    """Accumulates per-pixel CE over the pixel-tile axis; emits a per-batch-block
    partial sum at the last pixel tile."""
    j = pl.program_id(1)

    @pl.when(j == 0)
    def _():
        acc_ref[...] = jnp.zeros_like(acc_ref)

    x = logits_ref[...].astype(jnp.float32)        # (TB, C, TP), pixels on lanes
    t = targets_ref[...].astype(jnp.int32)         # (TB, 1, TP)

    # Numerically stable log-sum-exp over the class (sublane) axis.
    m = jnp.max(x, axis=1, keepdims=True)                               # (TB,1,TP)
    lse = m + jnp.log(jnp.sum(jnp.exp(x - m), axis=1, keepdims=True))   # (TB,1,TP)

    # Gather the target-class logit via a one-hot mask (>=2D iota).
    class_ids = jax.lax.broadcasted_iota(jnp.int32, x.shape, 1)
    onehot = (class_ids == t).astype(jnp.float32)
    tgt_logit = jnp.sum(x * onehot, axis=1, keepdims=True)              # (TB,1,TP)

    ce = lse - tgt_logit                                                # (TB,1,TP)

    if ragged:
        # Zero lanes past the true H*W extent (garbage reads in the last tile).
        tp = ce.shape[-1]
        lane = jax.lax.broadcasted_iota(jnp.int32, ce.shape, 2)
        ce = jnp.where(j * tp + lane < hw, ce, 0.0)

    # Pure-VPU lane-wise partial-sum accumulation (no per-step cross-lane work).
    acc_ref[...] += ce

    @pl.when(j == pl.num_programs(1) - 1)
    def _():
        out_ref[...] = jnp.full(out_ref.shape, jnp.sum(acc_ref[...]),
                                dtype=out_ref.dtype)


def _select_tiling(N, C, HW, logit_itemsize, tgt_itemsize,
                   target_step_bytes, vmem_budget_bytes):
    """Pick (batch_block, pixel_tile): ~target_step_bytes of HBM traffic per grid
    step, double-buffered VMEM working set under a v5e-safe budget."""
    bpp = C * logit_itemsize + tgt_itemsize            # HBM bytes / pixel / sample

    def vmem_bytes(tb, tp):
        # 2x double-buffered input tiles + conservatively padded f32 accumulator.
        return 2 * tb * bpp * tp + tb * 8 * 4 * tp

    target_px = max(128, target_step_bytes // bpp)

    if HW <= target_px:
        tile_hw = HW                                   # full spatial extent (legal)
    else:
        tile_hw = max(128, (target_px // 128) * 128)   # lane-aligned chunk

    tb_n = 1
    if tile_hw == HW:
        # One HW slab is below the target step size: block the batch dim too.
        for d in range(2, N + 1):
            if (N % d == 0 and d * HW * bpp <= target_step_bytes
                    and vmem_bytes(d, HW) <= vmem_budget_bytes):
                tb_n = d

    # VMEM safety (large class counts / narrow budgets): shrink the pixel tile.
    while vmem_bytes(tb_n, tile_hw) > vmem_budget_bytes and tile_hw > 128:
        tile_hw = max(128, (tile_hw // 2 // 128) * 128)

    return tb_n, tile_hw


def focal_loss(inputs, targets, alpha=1.0, gamma=2.0,
               target_step_bytes=2 << 20, vmem_budget_bytes=12 << 20):
    """inputs: (N, C, H, W) float logits (f32 or bf16); targets: (N, H, W) int ids."""
    N, C, H, W = inputs.shape
    HW = H * W
    total_pixels = N * HW

    # Free reshapes — native NCHW layout, pixels land on the last (lane) axis.
    # Targets keep their native (narrow) dtype; the kernel widens per tile.
    logits = inputs.reshape(N, C, HW)
    tgt = targets.reshape(N, 1, HW)

    tb_n, tile_hw = _select_tiling(
        N, C, HW,
        jnp.dtype(inputs.dtype).itemsize, jnp.dtype(targets.dtype).itemsize,
        target_step_bytes, vmem_budget_bytes)

    grid_n = N // tb_n
    grid_j = pl.cdiv(HW, tile_hw)
    ragged = (HW % tile_hw) != 0

    kernel = functools.partial(_ce_partial_kernel, hw=HW, ragged=ragged)

    partials = pl.pallas_call(
        kernel,
        out_shape=jax.ShapeDtypeStruct((grid_n, 8, 128), jnp.float32),
        grid_spec=pltpu.PrefetchScalarGridSpec(
            num_scalar_prefetch=0,
            grid=(grid_n, grid_j),
            in_specs=[
                pl.BlockSpec((tb_n, C, tile_hw), lambda n, j: (n, 0, j)),
                pl.BlockSpec((tb_n, 1, tile_hw), lambda n, j: (n, 0, j)),
            ],
            out_specs=pl.BlockSpec((1, 8, 128), lambda n, j: (n, 0, 0)),
            scratch_shapes=[pltpu.VMEM((tb_n, 1, tile_hw), jnp.float32)],
        ),
        # Batch-block axis is independent (per-block partial outputs) -> it can
        # be sharded across the two v7x TensorCores; pixel axis is a reduction.
        compiler_params=pltpu.CompilerParams(
            dimension_semantics=("parallel", "arbitrary"),
            vmem_limit_bytes=32 * 1024 * 1024,
        ),
    )(logits, tgt)

    # Tiny JAX epilogue: mean CE over all pixels + focal transform (one scalar).
    ce_mean = jnp.sum(partials[:, 0, 0]) / jnp.float32(total_pixels)
    pt = jnp.exp(-ce_mean)
    return alpha * (1.0 - pt) ** gamma * ce_mean


def _focal_loss_ref(inputs, targets, alpha=1.0, gamma=2.0):
    # Pure-JAX reference mirroring nn.CrossEntropyLoss + focal transform.
    N, C, H, W = inputs.shape
    logits = jnp.transpose(inputs, (0, 2, 3, 1)).reshape(-1, C).astype(jnp.float32)
    tgt = targets.reshape(-1)
    logp = jax.nn.log_softmax(logits, axis=-1)
    ce = -jnp.take_along_axis(logp, tgt[:, None], axis=-1).mean()
    pt = jnp.exp(-ce)
    return alpha * (1.0 - pt) ** gamma * ce


if __name__ == "__main__":
    key = jax.random.PRNGKey(0)
    k1, k2, k3, k4 = jax.random.split(key, 4)

    # Case 1: module-sized input (single fused grid step, batch-dim blocking).
    N, C, H, W = 2, 4, 16, 16
    inputs = jax.random.normal(k1, (N, C, H, W), dtype=jnp.float32)
    targets = jax.random.randint(k2, (N, H, W), 0, C, dtype=jnp.int32)

    loss = focal_loss(inputs, targets, alpha=1.0, gamma=2.0)
    jax.block_until_ready(loss)
    ref = _focal_loss_ref(inputs, targets, alpha=1.0, gamma=2.0)
    assert jnp.allclose(loss, ref, rtol=1e-5, atol=1e-6), (loss, ref)

    # Case 2: force multi-step pixel tiling + ragged-tile masking + grid_n > 1
    # (small target_step_bytes only to exercise those code paths cheaply).
    N2, C2, H2, W2 = 2, 4, 24, 20
    inputs2 = jax.random.normal(k3, (N2, C2, H2, W2), dtype=jnp.float32)
    targets2 = jax.random.randint(k4, (N2, H2, W2), 0, C2, dtype=jnp.int32)

    loss2 = focal_loss(inputs2, targets2, alpha=0.5, gamma=2.0,
                       target_step_bytes=128 * 20)
    jax.block_until_ready(loss2)
    ref2 = _focal_loss_ref(inputs2, targets2, alpha=0.5, gamma=2.0)
    assert jnp.allclose(loss2, ref2, rtol=1e-5, atol=1e-6), (loss2, ref2)

    print("KERNEL_OK")
</pallas_src>

<mosaic_0001>
module attributes {stable_mosaic.version = 11 : i64} {
  func.func @_ce_partial_kernel(%arg0: i32, %arg1: i32, %arg2: memref<2x4x256xf32, #tpu.memory_space<vmem>>, %arg3: memref<2x1x256xi32, #tpu.memory_space<vmem>>, %arg4: memref<1x8x128xf32, #tpu.memory_space<vmem>>, %arg5: memref<2x1x256xf32, #tpu.memory_space<vmem>>) attributes {dimension_semantics = [#tpu.dimension_semantics<parallel>, #tpu.dimension_semantics<arbitrary>], iteration_bounds = array<i64: 1, 1>, scalar_prefetch = 0 : i64, scratch_operands = 1 : i64, tpu.core_type = #tpu.core_type<tc>, window_params = [{transform_indices = @transform_0, window_bounds = array<i64: 2, 4, 256>}, {transform_indices = @transform_1, window_bounds = array<i64: 2, 1, 256>}, {transform_indices = @transform_2, window_bounds = array<i64: 1, 8, 128>}]} {
    %c0_i32 = arith.constant 0 : i32
    %0 = arith.cmpi eq, %arg1, %c0_i32 : i32
    %1 = arith.extui %0 : i1 to i32
    %c0_i32_0 = arith.constant 0 : i32
    %2 = arith.cmpi ne, %1, %c0_i32_0 : i32
    scf.if %2 {
      %cst_16 = arith.constant 0.000000e+00 : f32
      %29 = vector.broadcast %cst_16 : f32 to vector<2x1x256xf32>
      %c0_17 = arith.constant 0 : index
      %c0_18 = arith.constant 0 : index
      %c0_19 = arith.constant 0 : index
      %30 = vector.load %arg5[%c0_17, %c0_18, %c0_19] : memref<2x1x256xf32, #tpu.memory_space<vmem>>, vector<2x1x256xf32>
      tpu.vector_store %arg5[%c0_17, %c0_18, %c0_19], %29 {strides = array<i32>} : memref<2x1x256xf32, #tpu.memory_space<vmem>>, vector<2x1x256xf32>,
    } else {
    }
    %c0 = arith.constant 0 : index
    %c0_1 = arith.constant 0 : index
    %c0_2 = arith.constant 0 : index
    %3 = vector.load %arg2[%c0, %c0_1, %c0_2] : memref<2x4x256xf32, #tpu.memory_space<vmem>>, vector<2x4x256xf32>
    %c0_3 = arith.constant 0 : index
    %c0_4 = arith.constant 0 : index
    %c0_5 = arith.constant 0 : index
    %4 = vector.load %arg3[%c0_3, %c0_4, %c0_5] : memref<2x1x256xi32, #tpu.memory_space<vmem>>, vector<2x1x256xi32>
    %cst = arith.constant dense<0xFF800000> : vector<2x256xf32>
    %5 = vector.multi_reduction <maximumf>, %3, %cst [1] : vector<2x4x256xf32> to vector<2x256xf32>
    %6 = vector.shape_cast %5 : vector<2x256xf32> to vector<2x1x256xf32>
    %7 = vector.broadcast %6 : vector<2x1x256xf32> to vector<2x4x256xf32>
    %8 = arith.subf %3, %7 : vector<2x4x256xf32>
    %9 = math.exp %8 : vector<2x4x256xf32>
    %cst_6 = arith.constant dense<0.000000e+00> : vector<2x256xf32>
    %10 = vector.multi_reduction <add>, %9, %cst_6 [1] : vector<2x4x256xf32> to vector<2x256xf32>
    %11 = vector.shape_cast %10 : vector<2x256xf32> to vector<2x1x256xf32>
    %12 = math.log %11 : vector<2x1x256xf32>
    %13 = arith.addf %6, %12 : vector<2x1x256xf32>
    %14 = tpu.iota {dimensions = array<i32: 1>} : vector<2x4x256xi32>
    %15 = vector.broadcast %4 : vector<2x1x256xi32> to vector<2x4x256xi32>
    %16 = arith.cmpi eq, %14, %15 : vector<2x4x256xi32>
    %17 = arith.extui %16 : vector<2x4x256xi1> to vector<2x4x256xi32>
    %18 = arith.sitofp %17 : vector<2x4x256xi32> to vector<2x4x256xf32>
    %19 = arith.mulf %3, %18 : vector<2x4x256xf32>
    %cst_7 = arith.constant dense<0.000000e+00> : vector<2x256xf32>
    %20 = vector.multi_reduction <add>, %19, %cst_7 [1] : vector<2x4x256xf32> to vector<2x256xf32>
    %21 = vector.shape_cast %20 : vector<2x256xf32> to vector<2x1x256xf32>
    %22 = arith.subf %13, %21 : vector<2x1x256xf32>
    %c0_8 = arith.constant 0 : index
    %c0_9 = arith.constant 0 : index
    %c0_10 = arith.constant 0 : index
    %23 = vector.load %arg5[%c0_8, %c0_9, %c0_10] : memref<2x1x256xf32, #tpu.memory_space<vmem>>, vector<2x1x256xf32>
    %24 = arith.addf %23, %22 : vector<2x1x256xf32>
    %c0_11 = arith.constant 0 : index
    %c0_12 = arith.constant 0 : index
    %c0_13 = arith.constant 0 : index
    %25 = vector.load %arg5[%c0_11, %c0_12, %c0_13] : memref<2x1x256xf32, #tpu.memory_space<vmem>>, vector<2x1x256xf32>
    tpu.vector_store %arg5[%c0_11, %c0_12, %c0_13], %24 {strides = array<i32>} : memref<2x1x256xf32, #tpu.memory_space<vmem>>, vector<2x1x256xf32>,
    %c0_i32_14 = arith.constant 0 : i32
    %26 = arith.cmpi eq, %arg1, %c0_i32_14 : i32
    %27 = arith.extui %26 : i1 to i32
    %c0_i32_15 = arith.constant 0 : i32
    %28 = arith.cmpi ne, %27, %c0_i32_15 : i32
    scf.if %28 {
      %c0_16 = arith.constant 0 : index
      %c0_17 = arith.constant 0 : index
      %c0_18 = arith.constant 0 : index
      %29 = vector.load %arg5[%c0_16, %c0_17, %c0_18] : memref<2x1x256xf32, #tpu.memory_space<vmem>>, vector<2x1x256xf32>
      %30 = vector.shape_cast %29 : vector<2x1x256xf32> to vector<1x2x1x256xf32>
      %cst_19 = arith.constant dense<0.000000e+00> : vector<1xf32>
      %31 = vector.multi_reduction <add>, %30, %cst_19 [1, 2, 3] : vector<1x2x1x256xf32> to vector<1xf32>
      %32 = vector.shape_cast %31 : vector<1xf32> to vector<1x1x1x1xf32>
      %33 = vector.extract %32[0, 0, 0, 0] : f32 from vector<1x1x1x1xf32>
      %34 = vector.broadcast %33 : f32 to vector<1x8x128xf32>
      %c0_20 = arith.constant 0 : index
      %c0_21 = arith.constant 0 : index
      %c0_22 = arith.constant 0 : index
      %35 = vector.load %arg4[%c0_20, %c0_21, %c0_22] : memref<1x8x128xf32, #tpu.memory_space<vmem>>, vector<1x8x128xf32>
      tpu.vector_store %arg4[%c0_20, %c0_21, %c0_22], %34 {strides = array<i32>} : memref<1x8x128xf32, #tpu.memory_space<vmem>>, vector<1x8x128xf32>,
    } else {
    }
    return
  }
  func.func @transform_0(%arg0: i32, %arg1: i32) -> (i32, i32, i32) {
    %c0_i32 = arith.constant 0 : i32
    %c0_i32_0 = arith.constant 0 : i32
    return %arg0, %c0_i32, %arg1 : i32, i32, i32
  }
  func.func @transform_1(%arg0: i32, %arg1: i32) -> (i32, i32, i32) {
    %c0_i32 = arith.constant 0 : i32
    %c0_i32_0 = arith.constant 0 : i32
    return %arg0, %c0_i32, %arg1 : i32, i32, i32
  }
  func.func @transform_2(%arg0: i32, %arg1: i32) -> (i32, i32, i32) {
    %c0_i32 = arith.constant 0 : i32
    %c0_i32_0 = arith.constant 0 : i32
    %c0_i32_1 = arith.constant 0 : i32
    return %arg0, %c0_i32, %c0_i32_0 : i32, i32, i32
  }
}

</mosaic_0001>

<llo_original>
// kernel: tpu_custom_call.1
$region0: #{tpu_custom_call.1}
  #allocation0 [shape = 'u32[]', space=smem, size = 0x4, offset = 0x4, fixed_abs, tag = 'smem constant byte address 0x4 - core index']
  #allocation1 [shape = 'u32[144,128]{1,0:T(1,128)}', space=vmem, size = 0x12000, scoped, tag = 'internal scratch']
  #allocation2 [shape = 'f32[2,1,256]{2,1,0:T(1,128)}', space=vmem, size = 0x800, scoped, tag = 'scratch operand']
  %s0 = inlined_call_operand.hbm [shape: f32[2,4,256], index: 0, kind: input, shape index: {}]
  %s1 = inlined_call_operand.hbm [shape: s32[2,1,256], index: 1, kind: input, shape index: {}]
  %s2 = inlined_call_operand.hbm [shape: f32[1,8,128], index: 2, kind: output, shape index: {}]
  %s3 = sld [smem:[#allocation0]]
  $region34: #{tpu_custom_call.1} parent=0
    _
  %s5 = ssub.s32 1, %s3
  %s6 = scalar_select 0, %s5, %s3
  $region1: #{tpu_custom_call.1} parent=0
    #allocation3 [shape = 'u8[8192]{0}', space=vmem, size = 0x2000, scoped, tag = 'input window, operand 0, single buffered']
    #allocation4 [shape = 's32[1]{0}', space=sflag, size = 0x4, scoped, tag = 'scoped memory for tpu_custom_call.1']
    #allocation5 [shape = 's32[1]{0}', space=sflag, size = 0x4, scoped, tag = 'scoped memory for tpu_custom_call.1']
    #allocation6 [shape = 'u8[2048]{0}', space=vmem, size = 0x800, scoped, tag = 'input window, operand 1, single buffered']
    #allocation7 [shape = 's32[1]{0}', space=sflag, size = 0x4, scoped, tag = 'scoped memory for tpu_custom_call.1']
    #allocation8 [shape = 'u8[4096]{0}', space=vmem, size = 0x1000, scoped, tag = 'output window, operand 0, single buffered']
    %7 = vsyncpa [#allocation4], 0
    %8 = vsyncpa [#allocation7], 0
    %9 = vsyncpa [#allocation5], 0
    // Predicated region
    $region2: #{tpu_custom_call.1} parent=1 // pred_check
      _
    $region3: #{tpu_custom_call.1} parent=1 // pred_check_branch
      %11 = sbr.rel (0) target = $region5
    $region4: #{tpu_custom_call.1} parent=1 // pred_region
      %s13 = ssub.s32 256, 256
      %14 = vsyncadd [#allocation4], %s13
      %s15 = sshll.u32 [#allocation3], 4
      %s16 = int_to_ptr.vmem [resolvable:$true] %s15
      %21 = dma.hbm_to_vmem [thread:$0]  %s0, 256, %s16, [#allocation4], 128, 128, 8
    $region5: #{tpu_custom_call.1} parent=1 // pred_fallthru
      _
    // Predicated region
    $region6: #{tpu_custom_call.1} parent=1 // pred_check
      _
    $region7: #{tpu_custom_call.1} parent=1 // pred_check_branch
      %23 = sbr.rel (0) target = $region9
    $region8: #{tpu_custom_call.1} parent=1 // pred_region
      %s25 = ssub.s32 64, 64
      %26 = vsyncadd [#allocation7], %s25
      %s27 = sshll.u32 [#allocation6], 4
      %s28 = int_to_ptr.vmem [resolvable:$true] %s27
      %33 = dma.hbm_to_vmem [thread:$0]  %s1, 64, %s28, [#allocation7], 32, 32, 2
    $region9: #{tpu_custom_call.1} parent=1 // pred_fallthru
      _
    // Predicated region
    $region10: #{tpu_custom_call.1} parent=1 // pred_check
      _
    $region11: #{tpu_custom_call.1} parent=1 // pred_check_branch
      %35 = sbr.rel (0) target = $region13
    $region12: #{tpu_custom_call.1} parent=1 // pred_region
      %36 = dma.done [#allocation4], 256
    $region13: #{tpu_custom_call.1} parent=1 // pred_fallthru
      _
    // Predicated region
    $region14: #{tpu_custom_call.1} parent=1 // pred_check
      _
    $region15: #{tpu_custom_call.1} parent=1 // pred_check_branch
      %38 = sbr.rel (0) target = $region17
    $region16: #{tpu_custom_call.1} parent=1 // pred_region
      %39 = dma.done [#allocation7], 64
    $region17: #{tpu_custom_call.1} parent=1 // pred_fallthru
      _
    %p40 = scmp.eq.s32.totalorder 0, 0
    // Predicated region
    $region18: #{tpu_custom_call.1} parent=1 // pred_check
      %p41 = pneg %p40
    $region19: #{tpu_custom_call.1} parent=1 // pred_check_branch
      %43 = sbr.rel (%p41) target = $region21
    $region20: #{tpu_custom_call.1} parent=1 // pred_region
      %v44 = vlaneseq
      %vm45 = vcmp.ge.s32.totalorder %v44, 0
      %vm46 = vcmp.lt.s32.totalorder %v44, 256
      %vm47 = vmand %vm45, %vm46
      %48 = vst.msk [vmem:[#allocation2] sm:$0x3] %vm47, 0.0
      %49 = vst.msk [vmem:[#allocation2 + $0x2] sm:$0x3] %vm47, 0.0
    $region21: #{tpu_custom_call.1} parent=1 // pred_fallthru
      _
    %v50 = vld [vmem:[#allocation3] sm:$0xff]
    %v51 = vld [vmem:[#allocation3 + $0x8] sm:$0xff]
    %v52 = vld [vmem:[#allocation6] sm:$0x3]
    %v53 = vld [vmem:[#allocation6 + $0x2] sm:$0x3]
    %v56 = vcombine.high %v50, %v50
    %v57 = vcombine.high %v51, %v51
    %vm60 = vcmask 1043456
    %v61 = vsel %vm60, %v50, -inf
    %v62 = vrot.slane %v61, 4
    %v63 = vmax.f32 %v61, %v62
    %v64 = vrot.slane %v63, 2
    %v65 = vmax.f32 %v63, %v64
    %v66 = vrot.slane %v65, 1
    %v67 = vmax.f32 %v65, %v66
    %v68 = vsel %vm60, %v56, -inf
    %v69 = vrot.slane %v68, 4
    %v70 = vmax.f32 %v68, %v69
    %v71 = vrot.slane %v70, 2
    %v72 = vmax.f32 %v70, %v71
    %v73 = vrot.slane %v72, 1
    %v74 = vmax.f32 %v72, %v73
    %v75 = vsel %vm60, %v51, -inf
    %v76 = vrot.slane %v75, 4
    %v77 = vmax.f32 %v75, %v76
    %v78 = vrot.slane %v77, 2
    %v79 = vmax.f32 %v77, %v78
    %v80 = vrot.slane %v79, 1
    %v81 = vmax.f32 %v79, %v80
    %v82 = vsel %vm60, %v57, -inf
    %v83 = vrot.slane %v82, 4
    %v84 = vmax.f32 %v82, %v83
    %v85 = vrot.slane %v84, 2
    %v86 = vmax.f32 %v84, %v85
    %v87 = vrot.slane %v86, 1
    %v88 = vmax.f32 %v86, %v87
    %v93 = vcombine.low %v67, %v74
    %v94 = vcombine.low %v81, %v88
    %v97 = vsub.f32 %v50, %v93
    %v98 = vsub.f32 %v51, %v94
    %v99 = vmul.f32 %v97, 1.442695
    %v100 = vpow.pop %v99
    %v101 = vmul.f32 %v98, 1.442695
    %v102 = vpow.pop %v101
    %v105 = vcombine.high %v100, %v100
    %v106 = vcombine.high %v102, %v102
    %v109 = vsel %vm60, %v100, 0.0
    %v110 = vrot.slane %v109, 4
    %v111 = vadd.f32 %v109, %v110
    %v112 = vrot.slane %v111, 2
    %v113 = vadd.f32 %v111, %v112
    %v114 = vrot.slane %v113, 1
    %v115 = vadd.f32 %v113, %v114
    %v116 = vsel %vm60, %v105, 0.0
    %v117 = vrot.slane %v116, 4
    %v118 = vadd.f32 %v116, %v117
    %v119 = vrot.slane %v118, 2
    %v120 = vadd.f32 %v118, %v119
    %v121 = vrot.slane %v120, 1
    %v122 = vadd.f32 %v120, %v121
    %v123 = vsel %vm60, %v102, 0.0
    %v124 = vrot.slane %v123, 4
    %v125 = vadd.f32 %v123, %v124
    %v126 = vrot.slane %v125, 2
    %v127 = vadd.f32 %v125, %v126
    %v128 = vrot.slane %v127, 1
    %v129 = vadd.f32 %v127, %v128
    %v130 = vsel %vm60, %v106, 0.0
    %v131 = vrot.slane %v130, 4
    %v132 = vadd.f32 %v130, %v131
    %v133 = vrot.slane %v132, 2
    %v134 = vadd.f32 %v132, %v133
    %v135 = vrot.slane %v134, 1
    %v136 = vadd.f32 %v134, %v135
    %v137 = vlog2.pop %v115
    %v138 = vmul.f32 %v137, 0.6931472
    %v139 = vlog2.pop %v122
    %v140 = vmul.f32 %v139, 0.6931472
    %v141 = vlog2.pop %v129
    %v142 = vmul.f32 %v141, 0.6931472
    %v143 = vlog2.pop %v136
    %v144 = vmul.f32 %v143, 0.6931472
    %v145 = vadd.f32 %v67, %v138
    %v146 = vadd.f32 %v74, %v140
    %v147 = vadd.f32 %v81, %v142
    %v148 = vadd.f32 %v88, %v144
    %v149 = vlaneseq
    %v150 = vshrl.u32 %v149, 7
    %v151 = vlaneseq
    %v152 = vshrl.u32 %v151, 7
    %v153 = vsub.s32 0, %v152
    %v154 = vrot.slane %v52, %v153
    %v155 = vlaneseq
    %v156 = vshrl.u32 %v155, 7
    %v157 = vsub.s32 1, %v156
    %v158 = vrot.slane %v52, %v157
    %v159 = vlaneseq
    %v160 = vshrl.u32 %v159, 7
    %v161 = vsub.s32 0, %v160
    %v162 = vrot.slane %v53, %v161
    %v163 = vlaneseq
    %v164 = vshrl.u32 %v163, 7
    %v165 = vsub.s32 1, %v164
    %v166 = vrot.slane %v53, %v165
    %vm167 = vcmp.eq.s32.totalorder %v150, %v154
    %vm168 = vcmp.eq.s32.totalorder %v150, %v158
    %vm169 = vcmp.eq.s32.totalorder %v150, %v162
    %vm170 = vcmp.eq.s32.totalorder %v150, %v166
    %v171 = vsel %vm167, 1, 0
    %v172 = vsel %vm168, 1, 0
    %v173 = vsel %vm169, 1, 0
    %v174 = vsel %vm170, 1, 0
    %v175 = vcvt.s32.f32 %v171
    %v176 = vcvt.s32.f32 %v172
    %v177 = vcvt.s32.f32 %v173
    %v178 = vcvt.s32.f32 %v174
    %v183 = vcombine.low %v175, %v176
    %v184 = vcombine.low %v177, %v178
    %v187 = vmul.f32 %v50, %v183
    %v188 = vmul.f32 %v51, %v184
    %v191 = vcombine.high %v187, %v187
    %v192 = vcombine.high %v188, %v188
    %v195 = vsel %vm60, %v187, 0.0
    %v196 = vrot.slane %v195, 4
    %v197 = vadd.f32 %v195, %v196
    %v198 = vrot.slane %v197, 2
    %v199 = vadd.f32 %v197, %v198
    %v200 = vrot.slane %v199, 1
    %v201 = vadd.f32 %v199, %v200
    %v202 = vsel %vm60, %v191, 0.0
    %v203 = vrot.slane %v202, 4
    %v204 = vadd.f32 %v202, %v203
    %v205 = vrot.slane %v204, 2
    %v206 = vadd.f32 %v204, %v205
    %v207 = vrot.slane %v206, 1
    %v208 = vadd.f32 %v206, %v207
    %v209 = vsel %vm60, %v188, 0.0
    %v210 = vrot.slane %v209, 4
    %v211 = vadd.f32 %v209, %v210
    %v212 = vrot.slane %v211, 2
    %v213 = vadd.f32 %v211, %v212
    %v214 = vrot.slane %v213, 1
    %v215 = vadd.f32 %v213, %v214
    %v216 = vsel %vm60, %v192, 0.0
    %v217 = vrot.slane %v216, 4
    %v218 = vadd.f32 %v216, %v217
    %v219 = vrot.slane %v218, 2
    %v220 = vadd.f32 %v218, %v219
    %v221 = vrot.slane %v220, 1
    %v222 = vadd.f32 %v220, %v221
    %v223 = vsub.f32 %v145, %v201
    %v224 = vsub.f32 %v146, %v208
    %v225 = vsub.f32 %v147, %v215
    %v226 = vsub.f32 %v148, %v222
    %v227 = vld [vmem:[#allocation2] sm:$0x3]
    %v228 = vld [vmem:[#allocation2 + $0x2] sm:$0x3]
    %v233 = vcombine.low %v223, %v224
    %v235 = vunpack.c.l.s4 1966171168
    %v236 = vunpack.c.0.s8 %v235
    %v237 = vlaneseq
    %v238 = vshrl.u32 %v237, 7
    %v239 = vsub.s32 %v236, %v238
    %v240 = vrot.slane %v233, %v239
    %v242 = vunpack.c.l.s4 1966171168
    %v243 = vunpack.c.0.s8 %v242
    %v244 = vlaneseq
    %v245 = vshrl.u32 %v244, 7
    %v246 = vsub.s32 %v243, %v245
    %v247 = vrot.slane %v240, %v246
    %v248 = vcombine.low %v225, %v226
    %v250 = vunpack.c.l.s4 1966171168
    %v251 = vunpack.c.0.s8 %v250
    %v252 = vlaneseq
    %v253 = vshrl.u32 %v252, 7
    %v254 = vsub.s32 %v251, %v253
    %v255 = vrot.slane %v248, %v254
    %v257 = vunpack.c.l.s4 1966171168
    %v258 = vunpack.c.0.s8 %v257
    %v259 = vlaneseq
    %v260 = vshrl.u32 %v259, 7
    %v261 = vsub.s32 %v258, %v260
    %v262 = vrot.slane %v255, %v261
    %v265 = vadd.f32 %v227, %v247
    %v266 = vadd.f32 %v228, %v262
    %v267 = vlaneseq
    %vm268 = vcmp.ge.s32.totalorder %v267, 0
    %vm269 = vcmp.lt.s32.totalorder %v267, 256
    %vm270 = vmand %vm268, %vm269
    %271 = vst.msk [vmem:[#allocation2] sm:$0x3] %vm270, %v265
    %272 = vst.msk [vmem:[#allocation2 + $0x2] sm:$0x3] %vm270, %v266
    // Predicated region
    $region22: #{tpu_custom_call.1} parent=1 // pred_check
      %p273 = pneg %p40
    $region23: #{tpu_custom_call.1} parent=1 // pred_check_branch
      %275 = sbr.rel (%p273) target = $region25
    $region24: #{tpu_custom_call.1} parent=1 // pred_region
      %v276 = vld [vmem:[#allocation2] sm:$0x3]
      %v277 = vld [vmem:[#allocation2 + $0x2] sm:$0x3]
      %v280 = vlaneseq
      %v281 = vshrl.u32 %v280, 7
      %v282 = vsub.s32 0, %v281
      %v283 = vrot.slane %v276, %v282
      %v284 = vlaneseq
      %v285 = vshrl.u32 %v284, 7
      %v286 = vsub.s32 1, %v285
      %v287 = vrot.slane %v276, %v286
      %v288 = vlaneseq
      %v289 = vshrl.u32 %v288, 7
      %v290 = vsub.s32 0, %v289
      %v291 = vrot.slane %v277, %v290
      %v292 = vlaneseq
      %v293 = vshrl.u32 %v292, 7
      %v294 = vsub.s32 1, %v293
      %v295 = vrot.slane %v277, %v294
      %vm300 = vcmask 1040384
      %v301 = vsel %vm300, %v283, 0.0
      %v302 = vsel %vm300, %v287, 0.0
      %v303 = vadd.f32 %v301, %v302
      %v304 = vsel %vm300, %v291, 0.0
      %v305 = vadd.f32 %v303, %v304
      %v306 = vsel %vm300, %v295, 0.0
      %v307 = vadd.f32 %v305, %v306
      %308 = vadd.xlane.f32.xlu0 %v307
      %v309 = vpop.xlane.xlu0 %308
      %v310 = vrot.slane %v309, 4
      %v311 = vadd.f32 %v309, %v310
      %v312 = vrot.slane %v311, 2
      %v313 = vadd.f32 %v311, %v312
      %v314 = vrot.slane %v313, 1
      %v315 = vadd.f32 %v313, %v314
      %s316 = vtos %v315
      %v317 = vstv %s316
      %318 = vst [vmem:[#allocation8] sm:$0xff] %v317
    $region25: #{tpu_custom_call.1} parent=1 // pred_fallthru
      _
    // Predicated region
    $region26: #{tpu_custom_call.1} parent=1 // pred_check
      _
    $region27: #{tpu_custom_call.1} parent=1 // pred_check_branch
      %320 = sbr.rel (0) target = $region29
    $region28: #{tpu_custom_call.1} parent=1 // pred_region
      %s322 = ssub.s32 128, 128
      %323 = vsyncadd [#allocation5], %s322
      %s325 = sshll.u32 [#allocation8], 4
      %s326 = int_to_ptr.vmem [resolvable:$true] %s325
      %328 = dma.vmem_to_hbm [thread:$0]  %s326, 128, %s2, [#allocation5]
    $region29: #{tpu_custom_call.1} parent=1 // pred_fallthru
      _
    // Predicated region
    $region30: #{tpu_custom_call.1} parent=1 // pred_check
      _
    $region31: #{tpu_custom_call.1} parent=1 // pred_check_branch
      %330 = sbr.rel (0) target = $region33
    $region32: #{tpu_custom_call.1} parent=1 // pred_region
      %331 = dma.done [#allocation5], 128
    $region33: #{tpu_custom_call.1} parent=1 // pred_fallthru
      _
    %332 = vsyncpa [#allocation4], 1
    %333 = vsyncpa [#allocation7], 1
    %334 = vsyncpa [#allocation5], 1

</llo_original>
